<compile_context>
chip_gen: v7x
topology: tpu7x:2x2x1
jax: 0.10.0
libtpu: 0.0.40
codegen_flags: <defaults>
</compile_context>

<pallas_src>
import functools

import jax
import jax.numpy as jnp
from jax.experimental import pallas as pl
from jax.experimental.pallas import tpu as pltpu

BN_EPS = 1e-5
LRELU_SLOPE = 0.2


def _upconv_kernel(xp_ref, w_ref, y_ref, stat_ref, *, h_tile, width, cin):
    """ConvTranspose2d(4,2,1) row-tile as one fused im2col matmul + BN partial stats.

    xp_ref  : (1, H+2, W+2, Cin) bf16   zero-padded channels-last input (whole image of batch b)
    w_ref   : (9*Cin, 4*Cout)    bf16   fused im2col weight (taps x parities)
    y_ref   : (h_tile*W, 4*Cout) f32    conv-transpose output rows of this tile
    stat_ref: (1, 2, 4*Cout)     f32    per-tile [sum, sum of squares] per output column
    """
    i0 = pl.multiple_of(pl.program_id(1) * h_tile, h_tile)
    rows = h_tile * width

    # One dynamic load of the needed strip (+2 halo rows), then static 3x3 window slices.
    xs = xp_ref[0, pl.ds(i0, h_tile + 2), :, :]                    # (h_tile+2, W+2, Cin)
    pieces = [xs[u:u + h_tile, v:v + width, :]
              for u in range(3) for v in range(3)]                 # 9 x (h_tile, W, Cin)
    patch = jnp.concatenate(pieces, axis=-1).reshape(rows, 9 * cin)  # (rows, 9*Cin) bf16

    # Single MXU matmul covering all 4 output parities (N = 4*Cout), f32 accumulation.
    y = jnp.dot(patch, w_ref[...], preferred_element_type=jnp.float32)  # (rows, 4*Cout)

    y_ref[...] = y
    stat_ref[0, 0:1, :] = jnp.sum(y, axis=0, keepdims=True)
    stat_ref[0, 1:2, :] = jnp.sum(y * y, axis=0, keepdims=True)


def _bn_lrelu_kernel(y_ref, ab_ref, o_ref):
    """Apply per-column affine (gamma/rsqrt(var) folded) + LeakyReLU(0.2), lane-dense."""
    y = y_ref[...]                                   # (rows_t, 4*Cout) f32
    z = y * ab_ref[0:1, :] + ab_ref[1:2, :]
    o_ref[...] = jnp.where(z > 0, z, LRELU_SLOPE * z)


def _pick_h_tile(H, W):
    """Largest divisor of H whose row-tile (h*W) is a multiple of 8, <=1024 rows, >=2 tiles."""
    divs = [d for d in range(1, H + 1) if H % d == 0]
    for want_two in (True, False):
        cands = [d for d in divs
                 if (d * W) % 8 == 0 and d * W <= 1024 and (not want_two or H // d >= 2)]
        if cands:
            return max(cands)
    return H


@jax.jit
def dcgan_upconv_forward(x, weight, bias, gamma, beta):
    """x: (B, Cin, H, W) f32 NCHW; weight: (Cin, Cout, 4, 4); returns (B, Cout, 2H, 2W) f32."""
    del bias  # ConvTranspose bias is exactly cancelled by BatchNorm's batch-mean subtraction.
    B, Cin, H, W = x.shape
    Cout = weight.shape[1]
    C4 = 4 * Cout

    # NCHW -> NHWC in bf16 (halves wrapper-side bytes moved), zero-pad spatial dims by 1.
    # TODO(synk): fold the halo padding into the kernel's index_map to drop this HBM round trip.
    xp = jnp.pad(jnp.transpose(x.astype(jnp.bfloat16), (0, 2, 3, 1)),
                 ((0, 0), (1, 1), (1, 1), (0, 0)))

    # Fused im2col weight: (3x3 tap, Cin) x (parity, Cout). For parity p = 2*dy+dx the
    # nonzero taps are (u, v) = (dy+a, dx+b), a,b in {0,1}, with kernel index K[dy][a], K[dx][b].
    K = ((3, 1), (2, 0))
    w9 = jnp.zeros((3, 3, Cin, 4, Cout), jnp.float32)
    for dy in range(2):
        for dx in range(2):
            p = 2 * dy + dx
            for a in range(2):
                for b in range(2):
                    w9 = w9.at[dy + a, dx + b, :, p, :].set(
                        weight[:, :, K[dy][a], K[dx][b]].astype(jnp.float32))
    w9 = w9.reshape(9 * Cin, C4).astype(jnp.bfloat16)

    h_tile = _pick_h_tile(H, W)
    nH = H // h_tile
    rows_t = h_tile * W
    n_rows = B * H * W

    # ---- Pass 1: conv-transpose (sub-pixel layout) + per-tile BN partial sums ----
    y_sub, stats = pl.pallas_call(
        functools.partial(_upconv_kernel, h_tile=h_tile, width=W, cin=Cin),
        grid=(B, nH),
        in_specs=[
            pl.BlockSpec((1, H + 2, W + 2, Cin), lambda b, h: (b, 0, 0, 0)),
            pl.BlockSpec((9 * Cin, C4), lambda b, h: (0, 0)),
        ],
        out_specs=(
            pl.BlockSpec((rows_t, C4), lambda b, h: (b * nH + h, 0)),
            pl.BlockSpec((1, 2, C4), lambda b, h: (b * nH + h, 0, 0)),
        ),
        out_shape=(
            jax.ShapeDtypeStruct((n_rows, C4), jnp.float32),
            jax.ShapeDtypeStruct((B * nH, 2, C4), jnp.float32),
        ),
        compiler_params=pltpu.CompilerParams(
            dimension_semantics=("parallel", "parallel")),
    )(xp, w9)

    # ---- Tiny plain-JAX stat fold (O(Cout) work): fold tiles and parities, build affine ----
    col_sum = jnp.sum(stats[:, 0, :], axis=0)                     # (4*Cout,)
    col_sqs = jnp.sum(stats[:, 1, :], axis=0)
    ch_sum = jnp.sum(col_sum.reshape(4, Cout), axis=0)            # (Cout,)
    ch_sqs = jnp.sum(col_sqs.reshape(4, Cout), axis=0)
    cnt = jnp.float32(4 * n_rows)
    mean = ch_sum / cnt
    var = ch_sqs / cnt - mean * mean                              # biased variance (BN default)
    a_ch = gamma.astype(jnp.float32) * jax.lax.rsqrt(var + BN_EPS)
    b_ch = beta.astype(jnp.float32) - mean * a_ch
    ab = jnp.stack([jnp.tile(a_ch, 4), jnp.tile(b_ch, 4)], axis=0)  # (2, 4*Cout) f32

    # ---- Pass 2: normalize + LeakyReLU, tiled & parallel, output aliases its input ----
    out_sub = pl.pallas_call(
        _bn_lrelu_kernel,
        grid=(B * nH,),
        in_specs=[
            pl.BlockSpec((rows_t, C4), lambda i: (i, 0)),
            pl.BlockSpec((2, C4), lambda i: (0, 0)),
        ],
        out_specs=pl.BlockSpec((rows_t, C4), lambda i: (i, 0)),
        out_shape=jax.ShapeDtypeStruct((n_rows, C4), jnp.float32),
        input_output_aliases={0: 0},
        compiler_params=pltpu.CompilerParams(dimension_semantics=("parallel",)),
    )(y_sub, ab)

    # Pixel-shuffle (B*H*W, 4*Cout) -> NCHW: out[b, c, 2i+dy, 2j+dx].
    out = out_sub.reshape(B, H, W, 2, 2, Cout)
    out = jnp.transpose(out, (0, 5, 1, 3, 2, 4)).reshape(B, Cout, 2 * H, 2 * W)
    return out


def _reference(x, weight, bias, gamma, beta):
    """Pure-JAX f32 reference: conv_transpose via lhs-dilated conv + BN(batch) + LeakyReLU."""
    w_conv = jnp.flip(weight, axis=(2, 3)).transpose(1, 0, 2, 3)  # (Cout, Cin, 4, 4) OIHW
    y = jax.lax.conv_general_dilated(
        x, w_conv,
        window_strides=(1, 1),
        padding=((2, 2), (2, 2)),
        lhs_dilation=(2, 2),
        rhs_dilation=(1, 1),
        dimension_numbers=("NCHW", "OIHW", "NCHW"),
    )
    y = y + bias[None, :, None, None]
    mean = jnp.mean(y, axis=(0, 2, 3), keepdims=True)
    var = jnp.mean((y - mean) ** 2, axis=(0, 2, 3), keepdims=True)
    y = (y - mean) * jax.lax.rsqrt(var + BN_EPS)
    y = y * gamma[None, :, None, None] + beta[None, :, None, None]
    return jnp.where(y > 0, y, LRELU_SLOPE * y)


if __name__ == "__main__":
    B, Cin, Cout, H, W = 2, 4, 8, 16, 16

    key = jax.random.PRNGKey(0)
    kx, kw, kb = jax.random.split(key, 3)
    x = jax.random.normal(kx, (B, Cin, H, W), jnp.float32)
    weight = 0.1 * jax.random.normal(kw, (Cin, Cout, 4, 4), jnp.float32)
    bias = 0.1 * jax.random.normal(kb, (Cout,), jnp.float32)
    gamma = jnp.ones((Cout,), jnp.float32)   # BN weight init
    beta = jnp.zeros((Cout,), jnp.float32)   # BN bias init

    out = jax.block_until_ready(dcgan_upconv_forward(x, weight, bias, gamma, beta))
    assert out.shape == (B, Cout, 2 * H, 2 * W), out.shape

    ref = jax.block_until_ready(_reference(x, weight, bias, gamma, beta))
    max_err = float(jnp.max(jnp.abs(out - ref)))
    # bf16 MXU inputs (f32 accumulate) vs. a pure-f32 reference; BN's 1/std (~2.5x here)
    # amplifies the bf16 rounding, so allow a few e-2 of absolute slack.
    assert max_err < 5e-2, f"max abs error {max_err}"
    print("KERNEL_OK")
</pallas_src>

<mosaic_0001>
module attributes {stable_mosaic.version = 11 : i64} {
  func.func @_upconv_kernel(%arg0: i32, %arg1: i32, %arg2: memref<1x18x18x4xbf16, #tpu.memory_space<vmem>>, %arg3: memref<36x32xbf16, #tpu.memory_space<vmem>>, %arg4: memref<128x32xf32, #tpu.memory_space<vmem>>, %arg5: memref<1x2x32xf32, #tpu.memory_space<vmem>>) attributes {dimension_semantics = [#tpu.dimension_semantics<parallel>, #tpu.dimension_semantics<parallel>], iteration_bounds = array<i64: 2, 2>, scalar_prefetch = 0 : i64, scratch_operands = 0 : i64, tpu.core_type = #tpu.core_type<tc>, window_params = [{transform_indices = @transform_0, window_bounds = array<i64: 1, 18, 18, 4>}, {pipeline_mode = #tpu.pipeline_mode<synchronous>, transform_indices = @transform_1, window_bounds = array<i64: 36, 32>}, {transform_indices = @transform_2, window_bounds = array<i64: 128, 32>}, {transform_indices = @transform_3, window_bounds = array<i64: 1, 2, 32>}]} {
    %c8_i32 = arith.constant 8 : i32
    %0 = arith.muli %arg1, %c8_i32 : i32
    %1 = tpu.assume_multiple %0, 8 : i32
    %c0 = arith.constant 0 : index
    %2 = arith.index_cast %1 : i32 to index
    %c0_0 = arith.constant 0 : index
    %c0_1 = arith.constant 0 : index
    %3 = vector.load %arg2[%c0, %2, %c0_0, %c0_1] : memref<1x18x18x4xbf16, #tpu.memory_space<vmem>>, vector<1x10x18x4xbf16>
    %4 = vector.shape_cast %3 : vector<1x10x18x4xbf16> to vector<10x18x4xbf16>
    %5 = vector.extract_strided_slice %4 {offsets = [0, 0, 0], sizes = [8, 16, 4], strides = [1, 1, 1]} : vector<10x18x4xbf16> to vector<8x16x4xbf16>
    %6 = vector.extract_strided_slice %4 {offsets = [0, 1, 0], sizes = [8, 16, 4], strides = [1, 1, 1]} : vector<10x18x4xbf16> to vector<8x16x4xbf16>
    %7 = vector.extract_strided_slice %4 {offsets = [0, 2, 0], sizes = [8, 16, 4], strides = [1, 1, 1]} : vector<10x18x4xbf16> to vector<8x16x4xbf16>
    %8 = vector.extract_strided_slice %4 {offsets = [1, 0, 0], sizes = [8, 16, 4], strides = [1, 1, 1]} : vector<10x18x4xbf16> to vector<8x16x4xbf16>
    %9 = vector.extract_strided_slice %4 {offsets = [1, 1, 0], sizes = [8, 16, 4], strides = [1, 1, 1]} : vector<10x18x4xbf16> to vector<8x16x4xbf16>
    %10 = vector.extract_strided_slice %4 {offsets = [1, 2, 0], sizes = [8, 16, 4], strides = [1, 1, 1]} : vector<10x18x4xbf16> to vector<8x16x4xbf16>
    %11 = vector.extract_strided_slice %4 {offsets = [2, 0, 0], sizes = [8, 16, 4], strides = [1, 1, 1]} : vector<10x18x4xbf16> to vector<8x16x4xbf16>
    %12 = vector.extract_strided_slice %4 {offsets = [2, 1, 0], sizes = [8, 16, 4], strides = [1, 1, 1]} : vector<10x18x4xbf16> to vector<8x16x4xbf16>
    %13 = vector.extract_strided_slice %4 {offsets = [2, 2, 0], sizes = [8, 16, 4], strides = [1, 1, 1]} : vector<10x18x4xbf16> to vector<8x16x4xbf16>
    %14 = tpu.concatenate %5, %6, %7, %8, %9, %10, %11, %12, %13 in 2 : vector<8x16x4xbf16>, vector<8x16x4xbf16>, vector<8x16x4xbf16>, vector<8x16x4xbf16>, vector<8x16x4xbf16>, vector<8x16x4xbf16>, vector<8x16x4xbf16>, vector<8x16x4xbf16>, vector<8x16x4xbf16> -> vector<8x16x36xbf16>
    %15 = vector.shape_cast %14 : vector<8x16x36xbf16> to vector<128x36xbf16>
    %c0_2 = arith.constant 0 : index
    %c0_3 = arith.constant 0 : index
    %16 = vector.load %arg3[%c0_2, %c0_3] : memref<36x32xbf16, #tpu.memory_space<vmem>>, vector<36x32xbf16>
    %cst = arith.constant dense<0.000000e+00> : vector<128x32xf32>
    %17 = tpu.matmul %15, %16, %cst {dimension_numbers = #tpu.dot_dimension_numbers<[1], [0], [0], [1], [0, 0, 1, 1], [], []>} : vector<128x36xbf16>, vector<36x32xbf16>, vector<128x32xf32> -> vector<128x32xf32>
    %c0_4 = arith.constant 0 : index
    %c0_5 = arith.constant 0 : index
    %18 = vector.load %arg4[%c0_4, %c0_5] : memref<128x32xf32, #tpu.memory_space<vmem>>, vector<128x32xf32>
    tpu.vector_store %arg4[%c0_4, %c0_5], %17 {strides = array<i32>} : memref<128x32xf32, #tpu.memory_space<vmem>>, vector<128x32xf32>,
    %cst_6 = arith.constant dense<0.000000e+00> : vector<32xf32>
    %19 = vector.multi_reduction <add>, %17, %cst_6 [0] : vector<128x32xf32> to vector<32xf32>
    %20 = vector.shape_cast %19 : vector<32xf32> to vector<1x32xf32>
    %c0_7 = arith.constant 0 : index
    %c0_8 = arith.constant 0 : index
    %c0_9 = arith.constant 0 : index
    %21 = vector.load %arg5[%c0_7, %c0_8, %c0_9] : memref<1x2x32xf32, #tpu.memory_space<vmem>>, vector<1x1x32xf32>
    %22 = vector.shape_cast %21 : vector<1x1x32xf32> to vector<1x32xf32>
    %23 = vector.shape_cast %20 : vector<1x32xf32> to vector<1x1x32xf32>
    tpu.vector_store %arg5[%c0_7, %c0_8, %c0_9], %23 {strides = array<i32>} : memref<1x2x32xf32, #tpu.memory_space<vmem>>, vector<1x1x32xf32>,
    %24 = arith.mulf %17, %17 : vector<128x32xf32>
    %cst_10 = arith.constant dense<0.000000e+00> : vector<32xf32>
    %25 = vector.multi_reduction <add>, %24, %cst_10 [0] : vector<128x32xf32> to vector<32xf32>
    %26 = vector.shape_cast %25 : vector<32xf32> to vector<1x32xf32>
    %c0_11 = arith.constant 0 : index
    %c1 = arith.constant 1 : index
    %c0_12 = arith.constant 0 : index
    %27 = vector.load %arg5[%c0_11, %c1, %c0_12] : memref<1x2x32xf32, #tpu.memory_space<vmem>>, vector<1x1x32xf32>
    %28 = vector.shape_cast %27 : vector<1x1x32xf32> to vector<1x32xf32>
    %29 = vector.shape_cast %26 : vector<1x32xf32> to vector<1x1x32xf32>
    tpu.vector_store %arg5[%c0_11, %c1, %c0_12], %29 {strides = array<i32>} : memref<1x2x32xf32, #tpu.memory_space<vmem>>, vector<1x1x32xf32>,
    return
  }
  func.func @transform_0(%arg0: i32, %arg1: i32) -> (i32, i32, i32, i32) {
    %c0_i32 = arith.constant 0 : i32
    %c0_i32_0 = arith.constant 0 : i32
    %c0_i32_1 = arith.constant 0 : i32
    %c0_i32_2 = arith.constant 0 : i32
    return %arg0, %c0_i32, %c0_i32_0, %c0_i32_1 : i32, i32, i32, i32
  }
  func.func @transform_1(%arg0: i32, %arg1: i32) -> (i32, i32) {
    %c0_i32 = arith.constant 0 : i32
    %c0_i32_0 = arith.constant 0 : i32
    %c0_i32_1 = arith.constant 0 : i32
    return %c0_i32, %c0_i32_0 : i32, i32
  }
  func.func @transform_2(%arg0: i32, %arg1: i32) -> (i32, i32) {
    %c2_i32 = arith.constant 2 : i32
    %0 = arith.muli %arg0, %c2_i32 : i32
    %1 = arith.addi %0, %arg1 : i32
    %c0_i32 = arith.constant 0 : i32
    %c0_i32_0 = arith.constant 0 : i32
    return %1, %c0_i32 : i32, i32
  }
  func.func @transform_3(%arg0: i32, %arg1: i32) -> (i32, i32, i32) {
    %c2_i32 = arith.constant 2 : i32
    %0 = arith.muli %arg0, %c2_i32 : i32
    %1 = arith.addi %0, %arg1 : i32
    %c0_i32 = arith.constant 0 : i32
    %c0_i32_0 = arith.constant 0 : i32
    %c0_i32_1 = arith.constant 0 : i32
    return %1, %c0_i32, %c0_i32_0 : i32, i32, i32
  }
}

module attributes {stable_mosaic.version = 11 : i64} {
  func.func @_bn_lrelu_kernel(%arg0: i32, %arg1: memref<128x32xf32, #tpu.memory_space<vmem>>, %arg2: memref<2x32xf32, #tpu.memory_space<vmem>>, %arg3: memref<128x32xf32, #tpu.memory_space<vmem>>) attributes {dimension_semantics = [#tpu.dimension_semantics<parallel>], iteration_bounds = array<i64: 4>, scalar_prefetch = 0 : i64, scratch_operands = 0 : i64, tpu.core_type = #tpu.core_type<tc>, window_params = [{transform_indices = @transform_0, window_bounds = array<i64: 128, 32>}, {pipeline_mode = #tpu.pipeline_mode<synchronous>, transform_indices = @transform_1, window_bounds = array<i64: 2, 32>}, {transform_indices = @transform_2, window_bounds = array<i64: 128, 32>}]} {
    %c0 = arith.constant 0 : index
    %c0_0 = arith.constant 0 : index
    %0 = vector.load %arg1[%c0, %c0_0] : memref<128x32xf32, #tpu.memory_space<vmem>>, vector<128x32xf32>
    %c0_1 = arith.constant 0 : index
    %c0_2 = arith.constant 0 : index
    %1 = vector.load %arg2[%c0_1, %c0_2] : memref<2x32xf32, #tpu.memory_space<vmem>>, vector<1x32xf32>
    %2 = vector.broadcast %1 : vector<1x32xf32> to vector<128x32xf32>
    %3 = arith.mulf %0, %2 : vector<128x32xf32>
    %c1 = arith.constant 1 : index
    %c0_3 = arith.constant 0 : index
    %4 = vector.load %arg2[%c1, %c0_3] : memref<2x32xf32, #tpu.memory_space<vmem>>, vector<1x32xf32>
    %5 = vector.broadcast %4 : vector<1x32xf32> to vector<128x32xf32>
    %6 = arith.addf %3, %5 : vector<128x32xf32>
    %cst = arith.constant 0.000000e+00 : f32
    %7 = vector.broadcast %cst : f32 to vector<128x32xf32>
    %8 = arith.cmpf ogt, %6, %7 : vector<128x32xf32>
    %cst_4 = arith.constant 2.000000e-01 : f32
    %9 = vector.broadcast %cst_4 : f32 to vector<128x32xf32>
    %10 = arith.mulf %9, %6 : vector<128x32xf32>
    %11 = arith.select %8, %6, %10 : vector<128x32xi1>, vector<128x32xf32>
    %c0_5 = arith.constant 0 : index
    %c0_6 = arith.constant 0 : index
    %12 = vector.load %arg3[%c0_5, %c0_6] : memref<128x32xf32, #tpu.memory_space<vmem>>, vector<128x32xf32>
    tpu.vector_store %arg3[%c0_5, %c0_6], %11 {strides = array<i32>} : memref<128x32xf32, #tpu.memory_space<vmem>>, vector<128x32xf32>,
    return
  }
  func.func @transform_0(%arg0: i32) -> (i32, i32) {
    %c0_i32 = arith.constant 0 : i32
    %c0_i32_0 = arith.constant 0 : i32
    return %arg0, %c0_i32 : i32, i32
  }
  func.func @transform_1(%arg0: i32) -> (i32, i32) {
    %c0_i32 = arith.constant 0 : i32
    %c0_i32_0 = arith.constant 0 : i32
    %c0_i32_1 = arith.constant 0 : i32
    return %c0_i32, %c0_i32_0 : i32, i32
  }
  func.func @transform_2(%arg0: i32) -> (i32, i32) {
    %c0_i32 = arith.constant 0 : i32
    %c0_i32_0 = arith.constant 0 : i32
    return %arg0, %c0_i32 : i32, i32
  }
}

</mosaic_0001>

<llo_original>
// kernel: tile.17
$region0: #{tile.17}
  #allocation0 [shape = 's32[1]{0}', space=sflag, size = 0x4, scoped, tag = 'scoped memory for tile.17']
  %s0 = inlined_call_operand.vmem [shape: f32[8], index: 0, kind: input, shape index: {}]
  %s1 = inlined_call_operand.vmem [shape: f32[4,8], index: 1, kind: output, shape index: {}]
  // Predicated region
  $region2: #{tile.17} parent=0 // pred_check
    _
  $region3: #{tile.17} parent=0 // pred_check_branch
    %3 = sbr.rel (0) target = $region5
  $region4: #{tile.17} parent=0 // pred_region
    _
  $region5: #{tile.17} parent=0 // pred_fallthru
    _
  %v4 = vld [vmem:[%s0] ss:$0 sm:$0xff]
  %5 = vst [vmem:[%s1] sm:$0xf] %v4

// kernel: tile.19
$region0: #{tile.19}
  %s0 = inlined_call_operand.vmem [shape: f32[4,8], index: 0, kind: input, shape index: {}]
  %s1 = inlined_call_operand.vmem [shape: f32[1,32], index: 1, kind: output, shape index: {}]
  $region1: #{tile.19} parent=0
    #allocation0 [shape = 'u8[4096]{0}', space=vmem, size = 0x1000, scoped, tag = 'scoped mem for output reshape']
    #allocation1 [shape = 'u8[4096]{0}', space=vmem, size = 0x1000, scoped, tag = 'scoped mem for input reshape']
    %s3 = sshllo.u32 0, 4
    %v4 = vld [vmem:[%s0] sm:%s3]
    %5 = vst [vmem:[#allocation1] sm:%s3] %v4
    %v6 = vld [vmem:[#allocation1] sm:$0x1]
    %vm7 = vcmask 64512
    %8 = vst.msk [vmem:[#allocation0] sm:$0x1] %vm7, %v6
    %s9 = scalar_lea.vmem [#allocation1], 3
    %v10 = vld [vmem:[%s9] sm:$0x1]
    %11 = vrot.lane.b32.xlu0 %v10, 24
    %v12 = vpop.permute.xlu0 %11
    %vm13 = vcmask 261312
    %14 = vst.msk [vmem:[#allocation0] sm:$0x1] %vm13, %v12
    %s15 = scalar_lea.vmem [#allocation1], 2
    %v16 = vld [vmem:[%s15] sm:$0x1]
    %17 = vrot.lane.b32.xlu0 %v16, 16
    %v18 = vpop.permute.xlu0 %17
    %vm19 = vcmask 195712
    %20 = vst.msk [vmem:[#allocation0] sm:$0x1] %vm19, %v18
    %s21 = scalar_lea.vmem [#allocation1], 1
    %v22 = vld [vmem:[%s21] sm:$0x1]
    %23 = vrot.lane.b32.xlu0 %v22, 8
    %v24 = vpop.permute.xlu0 %23
    %vm25 = vcmask 130112
    %26 = vst.msk [vmem:[#allocation0] sm:$0x1] %vm25, %v24
    %s28 = sshllo.u32 0, 1
    %v30 = vld [vmem:[#allocation0] sm:%s28]
    %s31 = sshllo.u32 0, 1
    %32 = vst [vmem:[%s1] sm:%s31] %v30

// kernel: dcgan_upconv_forward.3
$region0: #{dcgan_upconv_forward.3}
  #allocation0 [shape = 'u32[]', space=smem, size = 0x4, offset = 0x4, fixed_abs, tag = 'smem constant byte address 0x4 - core index']
  #allocation1 [shape = 'u32[144,128]{1,0:T(1,128)}', space=vmem, size = 0x12000, scoped, tag = 'internal scratch']
  %s0 = inlined_call_operand.vmem [shape: f32[512,32], index: 0, kind: input, shape index: {}, may-alias: {0,2}]
  %s1 = inlined_call_operand.vmem [shape: f32[2,32], index: 1, kind: input, shape index: {}]
  %s2 = inlined_call_operand.vmem [shape: f32[512,32], index: 2, kind: output, shape index: {}, may-alias: {0,2}]
  %s3 = sld [smem:[#allocation0]]
  $region41: #{dcgan_upconv_forward.3} parent=0
    _
  %s5 = ssub.s32 1, %s3
  %s6 = scalar_select 0, %s5, %s3
  loop: start=0, step=1, limit=6
  $region2: #{dcgan_upconv_forward.3} parent=0 // loop_pre_header
    _
  $region3: #{dcgan_upconv_forward.3} parent=0 // loop_header
    %s8 = sphi 0, %s12
    %p9 = scmp.ge.s32.totalorder %s8, 6
    %s18 = sphi 0, %s20
    %s21 = sphi 0, %s18
    %s22 = sphi 0, %s21
    %s38 = sphi 0, %s22
    %s42 = sphi 0, %s42
    %s44 = sphi 0, %s42
    %s45 = sphi 0, %s44
    %s59 = sphi 0, %s45
    %s65 = sphi 0, %s67
    %s68 = sphi 0, %s65
    %s69 = sphi 0, %s68
    %s85 = sphi 0, %s69
  $region4: #{dcgan_upconv_forward.3} parent=0 // loop_header_branch
    %11 = sbr.rel (%p9) target = $region8
  $region5: #{dcgan_upconv_forward.3} parent=0 // loop_body
    %s13 = ssub.s32 %s8, 1
    %s14 = ssub.s32 %s8, 2
    %s15 = sadd.s32 %s8, 1
    %s16 = ssub.s32 %s8, %s15
    %p17 = scmp.eq.s32.totalorder %s16, 0
    %s19 = sadd.s32 %s18, 1
    %s20 = scalar_select %p17, %s18, %s19
    %p23 = pneg %p17
    %p24 = scmp.eq.s32.totalorder %s8, 3
    %p25 = por %p23, %p24
    %p26 = scmp.ne.s32.totalorder %s18, %s21
    %p27 = scmp.eq.s32.totalorder %s8, 0
    %p28 = por %p26, %p27
    %p29 = scmp.ne.s32.totalorder %s18, %s21
    %p30 = scmp.eq.s32.totalorder %s13, 3
    %p31 = por %p29, %p30
    %p32 = scmp.ne.s32.totalorder %s21, %s22
    %p33 = scmp.eq.s32.totalorder %s13, 0
    %p34 = por %p32, %p33
    %p35 = scmp.ne.s32.totalorder %s21, %s22
    %p36 = scmp.eq.s32.totalorder %s14, 3
    %p37 = por %p35, %p36
    %p39 = scmp.ne.s32.totalorder %s22, %s38
    %p40 = scmp.eq.s32.totalorder %s14, 0
    %p41 = por %p39, %p40
    %s43 = sadd.s32 %s42, 1
    %p46 = scmp.eq.s32.totalorder %s8, 3
    %p47 = scmp.ne.s32.totalorder %s42, %s44
    %p48 = scmp.eq.s32.totalorder %s8, 0
    %p49 = por %p47, %p48
    %p50 = scmp.ne.s32.totalorder %s42, %s44
    %p51 = scmp.eq.s32.totalorder %s13, 3
    %p52 = por %p50, %p51
    %p53 = scmp.ne.s32.totalorder %s44, %s45
    %p54 = scmp.eq.s32.totalorder %s13, 0
    %p55 = por %p53, %p54
    %p56 = scmp.ne.s32.totalorder %s44, %s45
    %p57 = scmp.eq.s32.totalorder %s14, 3
    %p58 = por %p56, %p57
    %p60 = scmp.ne.s32.totalorder %s45, %s59
    %p61 = scmp.eq.s32.totalorder %s14, 0
    %p62 = por %p60, %p61
    %s63 = ssub.s32 %s8, %s15
    %p64 = scmp.eq.s32.totalorder %s63, 0
    %s66 = sadd.s32 %s65, 1
    %s67 = scalar_select %p64, %s65, %s66
    %p70 = pneg %p64
    %p71 = scmp.eq.s32.totalorder %s8, 3
    %p72 = por %p70, %p71
    %p73 = scmp.ne.s32.totalorder %s65, %s68
    %p74 = scmp.eq.s32.totalorder %s8, 0
    %p75 = por %p73, %p74
    %p76 = scmp.ne.s32.totalorder %s65, %s68
    %p77 = scmp.eq.s32.totalorder %s13, 3
    %p78 = por %p76, %p77
    %p79 = scmp.ne.s32.totalorder %s68, %s69
    %p80 = scmp.eq.s32.totalorder %s13, 0
    %p81 = por %p79, %p80
    %p82 = scmp.ne.s32.totalorder %s68, %s69
    %p83 = scmp.eq.s32.totalorder %s14, 3
    %p84 = por %p82, %p83
    %p86 = scmp.ne.s32.totalorder %s69, %s85
    %p87 = scmp.eq.s32.totalorder %s14, 0
    %p88 = por %p86, %p87
    %p89 = scmp.le.s32.totalorder 1, %s8
    %p90 = scmp.lt.s32.totalorder %s8, 5
    %p91 = pnand %p89, %p90
    %p92 = pneg %p91
    // Predicated region
    $region9: #{dcgan_upconv_forward.3} parent=5 // pred_check
      _
    $region10: #{dcgan_upconv_forward.3} parent=5 // pred_check_branch
      %94 = sbr.rel (%p91) target = $region12
    $region11: #{dcgan_upconv_forward.3} parent=5 // pred_region
      %s95 = ssub.s32 %s8, 1
      // Predicated region
      $region13: #{dcgan_upconv_forward.3} parent=11 // pred_check
        %p96 = pneg %p55
      $region14: #{dcgan_upconv_forward.3} parent=11 // pred_check_branch
        %98 = sbr.rel (%p96) target = $region16
      $region15: #{dcgan_upconv_forward.3} parent=11 // pred_region
        _
      $region16: #{dcgan_upconv_forward.3} parent=11 // pred_fallthru
        _
    $region12: #{dcgan_upconv_forward.3} parent=5 // pred_fallthru
      _
    %p99 = scmp.lt.s32.totalorder %s8, 4
    // Predicated region
    $region17: #{dcgan_upconv_forward.3} parent=5 // pred_check
      %p100 = pneg %p99
    $region18: #{dcgan_upconv_forward.3} parent=5 // pred_check_branch
      %102 = sbr.rel (%p100) target = $region20
    $region19: #{dcgan_upconv_forward.3} parent=5 // pred_region
      // Predicated region
      $region21: #{dcgan_upconv_forward.3} parent=19 // pred_check
        %p103 = pneg %p28
      $region22: #{dcgan_upconv_forward.3} parent=19 // pred_check_branch
        %105 = sbr.rel (%p103) target = $region24
      $region23: #{dcgan_upconv_forward.3} parent=19 // pred_region
        %s106 = smul.u32 16, %s8
        %p107 = scmp.lt.s32.totalorder %s106, 63
        %s108 = scalar_select %p107, %s106, 63
        %s109 = smul.addr %s108, 8
        %s110 = scalar_lea.vmem %s0, %s109
        %s111 = smul.u32 16, %s8
      $region24: #{dcgan_upconv_forward.3} parent=19 // pred_fallthru
        _
    $region20: #{dcgan_upconv_forward.3} parent=5 // pred_fallthru
      _
    %p112 = scmp.le.s32.totalorder 1, %s8
    %p113 = scmp.lt.s32.totalorder %s8, 5
    %p114 = pnand %p112, %p113
    %p115 = pneg %p114
    // Predicated region
    $region25: #{dcgan_upconv_forward.3} parent=5 // pred_check
      _
    $region26: #{dcgan_upconv_forward.3} parent=5 // pred_check_branch
      %117 = sbr.rel (%p114) target = $region28
    $region27: #{dcgan_upconv_forward.3} parent=5 // pred_region
      %s118 = ssub.s32 %s8, 1
      %s119 = smul.u32 16, %s13
      %p120 = scmp.lt.s32.totalorder %s119, 63
      %s121 = scalar_select %p120, %s119, 63
      %s122 = smul.addr %s121, 8
      %s123 = scalar_lea.vmem %s0, %s122
      %p124 = pneg %p34
      %p125 = pneg %p31
      %p126 = pneg %p55
      %p127 = pneg %p52
      %p128 = pneg %p81
      %p129 = pneg %p78
      %s130 = smul.u32 16, %s13
      %p131 = scmp.lt.s32.totalorder %s130, 63
      %s132 = scalar_select %p131, %s130, 63
      %s133 = smul.addr %s132, 8
      %s134 = scalar_lea.vmem %s2, %s133
      %s135 = smul.u32 16, %s13
      %p136 = scmp.lt.s32.totalorder %s135, 63
      %s137 = scalar_select %p136, %s135, 63
      %s138 = smul.addr %s137, 8
      %s139 = scalar_lea.vmem %s0, %s138
      %s140 = smul.u32 16, %s13
      %s141 = smul.u32 16, %s13
      %p142 = scmp.lt.s32.totalorder %s141, 63
      %s143 = scalar_select %p142, %s141, 63
      %s144 = smul.addr %s143, 8
      %s145 = scalar_lea.vmem %s2, %s144
      %s146 = smul.u32 16, %s13
      %v147 = vld [vmem:[%s139] sm:$0xff]
      %v148 = vld [vmem:[%s139 + $0x8] sm:$0xff]
      %v149 = vld [vmem:[%s139 + $0x10] sm:$0xff]
      %v150 = vld [vmem:[%s139 + $0x18] sm:$0xff]
      %v151 = vld [vmem:[%s139 + $0x20] sm:$0xff]
      %v152 = vld [vmem:[%s139 + $0x28] sm:$0xff]
      %v153 = vld [vmem:[%s139 + $0x30] sm:$0xff]
      %v154 = vld [vmem:[%s139 + $0x38] sm:$0xff]
      %v155 = vld [vmem:[%s139 + $0x40] sm:$0xff]
      %v156 = vld [vmem:[%s139 + $0x48] sm:$0xff]
      %v157 = vld [vmem:[%s139 + $0x50] sm:$0xff]
      %v158 = vld [vmem:[%s139 + $0x58] sm:$0xff]
      %v159 = vld [vmem:[%s139 + $0x60] sm:$0xff]
      %v160 = vld [vmem:[%s139 + $0x68] sm:$0xff]
      %v161 = vld [vmem:[%s139 + $0x70] sm:$0xff]
      %v162 = vld [vmem:[%s139 + $0x78] sm:$0xff]
      %v163 = vld [vmem:[%s1] sm:$0x1]
      %v164 = vlaneseq
      %v165 = vshrl.u32 %v164, 7
      %v166 = vsub.s32 0, %v165
      %v167 = vrot.slane %v163, %v166
      %v168 = vmul.f32 %v147, %v167
      %v169 = vmul.f32 %v148, %v167
      %v170 = vmul.f32 %v149, %v167
      %v171 = vmul.f32 %v150, %v167
      %v172 = vmul.f32 %v151, %v167
      %v173 = vmul.f32 %v152, %v167
      %v174 = vmul.f32 %v153, %v167
      %v175 = vmul.f32 %v154, %v167
      %v176 = vmul.f32 %v155, %v167
      %v177 = vmul.f32 %v156, %v167
      %v178 = vmul.f32 %v157, %v167
      %v179 = vmul.f32 %v158, %v167
      %v180 = vmul.f32 %v159, %v167
      %v181 = vmul.f32 %v160, %v167
      %v182 = vmul.f32 %v161, %v167
      %v183 = vmul.f32 %v162, %v167
      %v184 = vld [vmem:[%s1 + $0x1] sm:$0x1]
      %v185 = vlaneseq
      %v186 = vshrl.u32 %v185, 7
      %v187 = vsub.s32 0, %v186
      %v188 = vrot.slane %v184, %v187
      %v189 = vadd.f32 %v168, %v188
      %v190 = vadd.f32 %v169, %v188
      %v191 = vadd.f32 %v170, %v188
      %v192 = vadd.f32 %v171, %v188
      %v193 = vadd.f32 %v172, %v188
      %v194 = vadd.f32 %v173, %v188
      %v195 = vadd.f32 %v174, %v188
      %v196 = vadd.f32 %v175, %v188
      %v197 = vadd.f32 %v176, %v188
      %v198 = vadd.f32 %v177, %v188
      %v199 = vadd.f32 %v178, %v188
      %v200 = vadd.f32 %v179, %v188
      %v201 = vadd.f32 %v180, %v188
      %v202 = vadd.f32 %v181, %v188
      %v203 = vadd.f32 %v182, %v188
      %v204 = vadd.f32 %v183, %v188
      %vm205 = vcmp.gt.f32.partialorder %v189, 0.0
      %vm206 = vcmp.gt.f32.partialorder %v190, 0.0
      %vm207 = vcmp.gt.f32.partialorder %v191, 0.0
      %vm208 = vcmp.gt.f32.partialorder %v192, 0.0
      %vm209 = vcmp.gt.f32.partialorder %v193, 0.0
      %vm210 = vcmp.gt.f32.partialorder %v194, 0.0
      %vm211 = vcmp.gt.f32.partialorder %v195, 0.0
      %vm212 = vcmp.gt.f32.partialorder %v196, 0.0
      %vm213 = vcmp.gt.f32.partialorder %v197, 0.0
      %vm214 = vcmp.gt.f32.partialorder %v198, 0.0
      %vm215 = vcmp.gt.f32.partialorder %v199, 0.0
      %vm216 = vcmp.gt.f32.partialorder %v200, 0.0
      %vm217 = vcmp.gt.f32.partialorder %v201, 0.0
      %vm218 = vcmp.gt.f32.partialorder %v202, 0.0
      %vm219 = vcmp.gt.f32.partialorder %v203, 0.0
      %vm220 = vcmp.gt.f32.partialorder %v204, 0.0
      %v221 = vmul.f32 %v189, 0.2
      %v222 = vmul.f32 %v190, 0.2
      %v223 = vmul.f32 %v191, 0.2
      %v224 = vmul.f32 %v192, 0.2
      %v225 = vmul.f32 %v193, 0.2
      %v226 = vmul.f32 %v194, 0.2
      %v227 = vmul.f32 %v195, 0.2
      %v228 = vmul.f32 %v196, 0.2
      %v229 = vmul.f32 %v197, 0.2
      %v230 = vmul.f32 %v198, 0.2
      %v231 = vmul.f32 %v199, 0.2
      %v232 = vmul.f32 %v200, 0.2
      %v233 = vmul.f32 %v201, 0.2
      %v234 = vmul.f32 %v202, 0.2
      %v235 = vmul.f32 %v203, 0.2
      %v236 = vmul.f32 %v204, 0.2
      %v237 = vsel %vm205, %v189, %v221
      %v238 = vsel %vm206, %v190, %v222
      %v239 = vsel %vm207, %v191, %v223
      %v240 = vsel %vm208, %v192, %v224
      %v241 = vsel %vm209, %v193, %v225
      %v242 = vsel %vm210, %v194, %v226
      %v243 = vsel %vm211, %v195, %v227
      %v244 = vsel %vm212, %v196, %v228
      %v245 = vsel %vm213, %v197, %v229
      %v246 = vsel %vm214, %v198, %v230
      %v247 = vsel %vm215, %v199, %v231
      %v248 = vsel %vm216, %v200, %v232
      %v249 = vsel %vm217, %v201, %v233
      %v250 = vsel %vm218, %v202, %v234
      %v251 = vsel %vm219, %v203, %v235
      %v252 = vsel %vm220, %v204, %v236
      %vm253 = vcmask 261120
      %254 = vst.msk [vmem:[%s145] sm:$0xff] %vm253, %v237
      %255 = vst.msk [vmem:[%s145 + $0x8] sm:$0xff] %vm253, %v238
      %256 = vst.msk [vmem:[%s145 + $0x10] sm:$0xff] %vm253, %v239
      %257 = vst.msk [vmem:[%s145 + $0x18] sm:$0xff] %vm253, %v240
      %258 = vst.msk [vmem:[%s145 + $0x20] sm:$0xff] %vm253, %v241
      %259 = vst.msk [vmem:[%s145 + $0x28] sm:$0xff] %vm253, %v242
      %260 = vst.msk [vmem:[%s145 + $0x30] sm:$0xff] %vm253, %v243
      %261 = vst.msk [vmem:[%s145 + $0x38] sm:$0xff] %vm253, %v244
      %262 = vst.msk [vmem:[%s145 + $0x40] sm:$0xff] %vm253, %v245
      %263 = vst.msk [vmem:[%s145 + $0x48] sm:$0xff] %vm253, %v246
      %264 = vst.msk [vmem:[%s145 + $0x50] sm:$0xff] %vm253, %v247
      %265 = vst.msk [vmem:[%s145 + $0x58] sm:$0xff] %vm253, %v248
      %266 = vst.msk [vmem:[%s145 + $0x60] sm:$0xff] %vm253, %v249
      %267 = vst.msk [vmem:[%s145 + $0x68] sm:$0xff] %vm253, %v250
      %268 = vst.msk [vmem:[%s145 + $0x70] sm:$0xff] %vm253, %v251
      %269 = vst.msk [vmem:[%s145 + $0x78] sm:$0xff] %vm253, %v252
      %s270 = smul.u32 16, %s13
      %p271 = scmp.lt.s32.totalorder %s270, 63
      %s272 = scalar_select %p271, %s270, 63
      %s273 = smul.addr %s272, 8
      %s274 = scalar_lea.vmem %s2, %s273
      // Predicated region
      $region29: #{dcgan_upconv_forward.3} parent=27 // pred_check
        %p275 = pneg %p78
      $region30: #{dcgan_upconv_forward.3} parent=27 // pred_check_branch
        %277 = sbr.rel (%p275) target = $region32
      $region31: #{dcgan_upconv_forward.3} parent=27 // pred_region
        %s278 = smul.u32 16, %s13
      $region32: #{dcgan_upconv_forward.3} parent=27 // pred_fallthru
        _
    $region28: #{dcgan_upconv_forward.3} parent=5 // pred_fallthru
      _
    %p279 = scmp.le.s32.totalorder 2, %s8
    // Predicated region
    $region33: #{dcgan_upconv_forward.3} parent=5 // pred_check
      %p280 = pneg %p279
    $region34: #{dcgan_upconv_forward.3} parent=5 // pred_check_branch
      %282 = sbr.rel (%p280) target = $region36
    $region35: #{dcgan_upconv_forward.3} parent=5 // pred_region
      %s283 = ssub.s32 %s8, 2
      // Predicated region
      $region37: #{dcgan_upconv_forward.3} parent=35 // pred_check
        %p284 = pneg %p84
      $region38: #{dcgan_upconv_forward.3} parent=35 // pred_check_branch
        %286 = sbr.rel (%p284) target = $region40
      $region39: #{dcgan_upconv_forward.3} parent=35 // pred_region
        %s287 = smul.u32 16, %s14
        %p288 = scmp.lt.s32.totalorder %s287, 63
        %s289 = scalar_select %p288, %s287, 63
        %s290 = smul.addr %s289, 8
        %s291 = scalar_lea.vmem %s2, %s290
      $region40: #{dcgan_upconv_forward.3} parent=35 // pred_fallthru
        _
    $region36: #{dcgan_upconv_forward.3} parent=5 // pred_fallthru
      _
  $region6: #{dcgan_upconv_forward.3} parent=0 // loop_footer
    %s12 = sadd.s32 1, %s8
  $region7: #{dcgan_upconv_forward.3} parent=0 // loop_footer_branch
    %7 = sbr.rel target = $region3
  $region8: #{dcgan_upconv_forward.3} parent=0 // loop_exit
    _

// kernel: dcgan_upconv_forward.2
$region0: #{dcgan_upconv_forward.2}
  #allocation0 [shape = 'u32[]', space=smem, size = 0x4, offset = 0x4, fixed_abs, tag = 'smem constant byte address 0x4 - core index']
  #allocation1 [shape = 'u32[144,128]{1,0:T(1,128)}', space=vmem, size = 0x12000, scoped, tag = 'internal scratch']
  %s0 = inlined_call_operand.vmem [shape: bf16[2,18,18,4], index: 0, kind: input, shape index: {}]
  %s1 = inlined_call_operand.vmem [shape: bf16[36,32], index: 1, kind: input, shape index: {}]
  %s2 = inlined_call_operand.vmem [shape: f32[512,32], index: 2, kind: output, shape index: {0}]
  %s3 = inlined_call_operand.vmem [shape: f32[4,2,32], index: 3, kind: output, shape index: {1}]
  %4 = xla_tuple %s2, %s3
  %s5 = sld [smem:[#allocation0]]
  $region49: #{dcgan_upconv_forward.2} parent=0
    _
  %s7 = ssub.s32 1, %s5
  %s8 = scalar_select 0, %s7, %s5
  loop: start=0, step=1, limit=6
  $region2: #{dcgan_upconv_forward.2} parent=0 // loop_pre_header
    _
  $region3: #{dcgan_upconv_forward.2} parent=0 // loop_header
    %s10 = sphi 0, %s14
    %p11 = scmp.ge.s32.totalorder %s10, 6
    %s17 = sphi 0, %s29
    %s18 = sphi 0, %s25
    %s19 = sphi 0, %s17
    %s20 = sphi 0, %s18
    %s21 = sphi 0, %s19
    %s22 = sphi 0, %s20
    %s32 = sphi 0, %s34
    %s35 = sphi 0, %s32
    %s36 = sphi 0, %s35
    %s52 = sphi 0, %s36
    %s56 = sphi 0, %s56
    %s58 = sphi 0, %s56
    %s59 = sphi 0, %s58
    %s73 = sphi 0, %s59
    %s83 = sphi 0, %s85
    %s86 = sphi 0, %s83
    %s87 = sphi 0, %s86
    %s103 = sphi 0, %s87
    %s113 = sphi 0, %s115
    %s116 = sphi 0, %s113
    %s117 = sphi 0, %s116
    %s133 = sphi 0, %s117
  $region4: #{dcgan_upconv_forward.2} parent=0 // loop_header_branch
    %13 = sbr.rel (%p11) target = $region8
  $region5: #{dcgan_upconv_forward.2} parent=0 // loop_body
    %s15 = ssub.s32 %s10, 1
    %s16 = ssub.s32 %s10, 2
    %s23 = sadd.s32 1, %s18
    %p24 = scmp.ge.s32.totalorder %s23, 2
    %s25 = scalar_select %p24, 0, %s23
    %s26 = sadd.s32 1, %s17
    %s27 = scalar_select %p24, %s26, %s17
    %p28 = scmp.ge.s32.totalorder %s27, 2
    %s29 = scalar_select %p28, 0, %s27
    %s30 = ssub.s32 %s17, %s29
    %p31 = scmp.eq.s32.totalorder %s30, 0
    %s33 = sadd.s32 %s32, 1
    %s34 = scalar_select %p31, %s32, %s33
    %p37 = pneg %p31
    %p38 = scmp.eq.s32.totalorder %s10, 3
    %p39 = por %p37, %p38
    %p40 = scmp.ne.s32.totalorder %s32, %s35
    %p41 = scmp.eq.s32.totalorder %s10, 0
    %p42 = por %p40, %p41
    %p43 = scmp.ne.s32.totalorder %s32, %s35
    %p44 = scmp.eq.s32.totalorder %s15, 3
    %p45 = por %p43, %p44
    %p46 = scmp.ne.s32.totalorder %s35, %s36
    %p47 = scmp.eq.s32.totalorder %s15, 0
    %p48 = por %p46, %p47
    %p49 = scmp.ne.s32.totalorder %s35, %s36
    %p50 = scmp.eq.s32.totalorder %s16, 3
    %p51 = por %p49, %p50
    %p53 = scmp.ne.s32.totalorder %s36, %s52
    %p54 = scmp.eq.s32.totalorder %s16, 0
    %p55 = por %p53, %p54
    %s57 = sadd.s32 %s56, 1
    %p60 = scmp.eq.s32.totalorder %s10, 3
    %p61 = scmp.ne.s32.totalorder %s56, %s58
    %p62 = scmp.eq.s32.totalorder %s10, 0
    %p63 = por %p61, %p62
    %p64 = scmp.ne.s32.totalorder %s56, %s58
    %p65 = scmp.eq.s32.totalorder %s15, 3
    %p66 = por %p64, %p65
    %p67 = scmp.ne.s32.totalorder %s58, %s59
    %p68 = scmp.eq.s32.totalorder %s15, 0
    %p69 = por %p67, %p68
    %p70 = scmp.ne.s32.totalorder %s58, %s59
    %p71 = scmp.eq.s32.totalorder %s16, 3
    %p72 = por %p70, %p71
    %p74 = scmp.ne.s32.totalorder %s59, %s73
    %p75 = scmp.eq.s32.totalorder %s16, 0
    %p76 = por %p74, %p75
    %s77 = smul.u32 %s17, 2
    %s78 = sadd.s32 %s77, %s18
    %s79 = smul.u32 %s29, 2
    %s80 = sadd.s32 %s79, %s25
    %s81 = ssub.s32 %s78, %s80
    %p82 = scmp.eq.s32.totalorder %s81, 0
    %s84 = sadd.s32 %s83, 1
    %s85 = scalar_select %p82, %s83, %s84
    %p88 = pneg %p82
    %p89 = scmp.eq.s32.totalorder %s10, 3
    %p90 = por %p88, %p89
    %p91 = scmp.ne.s32.totalorder %s83, %s86
    %p92 = scmp.eq.s32.totalorder %s10, 0
    %p93 = por %p91, %p92
    %p94 = scmp.ne.s32.totalorder %s83, %s86
    %p95 = scmp.eq.s32.totalorder %s15, 3
    %p96 = por %p94, %p95
    %p97 = scmp.ne.s32.totalorder %s86, %s87
    %p98 = scmp.eq.s32.totalorder %s15, 0
    %p99 = por %p97, %p98
    %p100 = scmp.ne.s32.totalorder %s86, %s87
    %p101 = scmp.eq.s32.totalorder %s16, 3
    %p102 = por %p100, %p101
    %p104 = scmp.ne.s32.totalorder %s87, %s103
    %p105 = scmp.eq.s32.totalorder %s16, 0
    %p106 = por %p104, %p105
    %s107 = smul.u32 %s17, 2
    %s108 = sadd.s32 %s107, %s18
    %s109 = smul.u32 %s29, 2
    %s110 = sadd.s32 %s109, %s25
    %s111 = ssub.s32 %s108, %s110
    %p112 = scmp.eq.s32.totalorder %s111, 0
    %s114 = sadd.s32 %s113, 1
    %s115 = scalar_select %p112, %s113, %s114
    %p118 = pneg %p112
    %p119 = scmp.eq.s32.totalorder %s10, 3
    %p120 = por %p118, %p119
    %p121 = scmp.ne.s32.totalorder %s113, %s116
    %p122 = scmp.eq.s32.totalorder %s10, 0
    %p123 = por %p121, %p122
    %p124 = scmp.ne.s32.totalorder %s113, %s116
    %p125 = scmp.eq.s32.totalorder %s15, 3
    %p126 = por %p124, %p125
    %p127 = scmp.ne.s32.totalorder %s116, %s117
    %p128 = scmp.eq.s32.totalorder %s15, 0
    %p129 = por %p127, %p128
    %p130 = scmp.ne.s32.totalorder %s116, %s117
    %p131 = scmp.eq.s32.totalorder %s16, 3
    %p132 = por %p130, %p131
    %p134 = scmp.ne.s32.totalorder %s117, %s133
    %p135 = scmp.eq.s32.totalorder %s16, 0
    %p136 = por %p134, %p135
    %p137 = scmp.le.s32.totalorder 1, %s10
    %p138 = scmp.lt.s32.totalorder %s10, 5
    %p139 = pnand %p137, %p138
    %p140 = pneg %p139
    // Predicated region
    $region9: #{dcgan_upconv_forward.2} parent=5 // pred_check
      _
    $region10: #{dcgan_upconv_forward.2} parent=5 // pred_check_branch
      %142 = sbr.rel (%p139) target = $region12
    $region11: #{dcgan_upconv_forward.2} parent=5 // pred_region
      %s143 = ssub.s32 %s10, 1
      // Predicated region
      $region13: #{dcgan_upconv_forward.2} parent=11 // pred_check
        %p144 = pneg %p69
      $region14: #{dcgan_upconv_forward.2} parent=11 // pred_check_branch
        %146 = sbr.rel (%p144) target = $region16
      $region15: #{dcgan_upconv_forward.2} parent=11 // pred_region
        _
      $region16: #{dcgan_upconv_forward.2} parent=11 // pred_fallthru
        _
    $region12: #{dcgan_upconv_forward.2} parent=5 // pred_fallthru
      _
    %p147 = scmp.lt.s32.totalorder %s10, 4
    // Predicated region
    $region17: #{dcgan_upconv_forward.2} parent=5 // pred_check
      %p148 = pneg %p147
    $region18: #{dcgan_upconv_forward.2} parent=5 // pred_check_branch
      %150 = sbr.rel (%p148) target = $region20
    $region19: #{dcgan_upconv_forward.2} parent=5 // pred_region
      // Predicated region
      $region21: #{dcgan_upconv_forward.2} parent=19 // pred_check
        %p151 = pneg %p42
      $region22: #{dcgan_upconv_forward.2} parent=19 // pred_check_branch
        %153 = sbr.rel (%p151) target = $region24
      $region23: #{dcgan_upconv_forward.2} parent=19 // pred_region
        %p154 = scmp.lt.s32.totalorder %s17, 1
        %s155 = scalar_select %p154, %s17, 1
        %s156 = smul.addr %s155, 54
        %s157 = smul.addr %s156, 4
        %s158 = scalar_lea.vmem %s0, %s157
      $region24: #{dcgan_upconv_forward.2} parent=19 // pred_fallthru
        _
    $region20: #{dcgan_upconv_forward.2} parent=5 // pred_fallthru
      _
    %p159 = scmp.le.s32.totalorder 1, %s10
    %p160 = scmp.lt.s32.totalorder %s10, 5
    %p161 = pnand %p159, %p160
    %p162 = pneg %p161
    // Predicated region
    $region25: #{dcgan_upconv_forward.2} parent=5 // pred_check
      _
    $region26: #{dcgan_upconv_forward.2} parent=5 // pred_check_branch
      %164 = sbr.rel (%p161) target = $region28
    $region27: #{dcgan_upconv_forward.2} parent=5 // pred_region
      %s165 = ssub.s32 %s10, 1
      %p166 = scmp.lt.s32.totalorder %s19, 1
      %s167 = scalar_select %p166, %s19, 1
      %s168 = smul.addr %s167, 54
      %s169 = smul.addr %s168, 4
      %s170 = scalar_lea.vmem %s0, %s169
      %p171 = pneg %p48
      %p172 = pneg %p45
      %p173 = pneg %p69
      %p174 = pneg %p66
      %p175 = pneg %p99
      %p176 = pneg %p96
      %s177 = smul.u32 %s19, 2
      %s178 = sadd.s32 %s177, %s20
      %s179 = smul.u32 16, %s178
      %p180 = scmp.lt.s32.totalorder %s179, 63
      %s181 = scalar_select %p180, %s179, 63
      %s182 = smul.addr %s181, 8
      %s183 = scalar_lea.vmem %s2, %s182
      %p184 = pneg %p129
      %p185 = pneg %p126
      %s186 = smul.u32 %s19, 2
      %s187 = sadd.s32 %s186, %s20
      %p188 = scmp.lt.s32.totalorder %s187, 3
      %s189 = scalar_select %p188, %s187, 3
      %s190 = smul.addr %s189, 2
      %s191 = scalar_lea.vmem %s3, %s190
      %p192 = scmp.lt.s32.totalorder %s19, 1
      %s193 = scalar_select %p192, %s19, 1
      %s194 = smul.addr %s193, 54
      %s195 = smul.addr %s194, 4
      %s196 = scalar_lea.vmem %s0, %s195
      %s197 = smul.u32 %s19, 2
      %s198 = sadd.s32 %s197, %s20
      %s199 = smul.u32 16, %s198
      %p200 = scmp.lt.s32.totalorder %s199, 63
      %s201 = scalar_select %p200, %s199, 63
      %s202 = smul.addr %s201, 8
      %s203 = scalar_lea.vmem %s2, %s202
      %s204 = smul.u32 %s19, 2
      %s205 = sadd.s32 %s204, %s20
      %s206 = smul.u32 16, %s205
      %s207 = smul.u32 %s19, 2
      %s208 = sadd.s32 %s207, %s20
      %p209 = scmp.lt.s32.totalorder %s208, 3
      %s210 = scalar_select %p209, %s208, 3
      %s211 = smul.addr %s210, 2
      %s212 = scalar_lea.vmem %s3, %s211
      %s213 = smul.u32 %s19, 2
      %s214 = sadd.s32 %s213, %s20
      %s216 = smul.u32 %s20, 8
      %s217 = smul.u32 %s216, 3
      %s218 = smul.addr %s217, 4
      %s219 = scalar_lea.vmem %s196, %s218
      %v220 = vld [vmem:[%s219] sm:$0xf]
      %v221 = vld [vmem:[%s219 + $0x4] sm:$0xf]
      %v222 = vld [vmem:[%s219 + $0x8] sm:$0x1]
      %v223 = vld [vmem:[%s219 + $0xc] sm:$0xf]
      %v224 = vld [vmem:[%s219 + $0x10] sm:$0xf]
      %v225 = vld [vmem:[%s219 + $0x14] sm:$0x1]
      %v226 = vld [vmem:[%s219 + $0x18] sm:$0xf]
      %v227 = vld [vmem:[%s219 + $0x1c] sm:$0xf]
      %v228 = vld [vmem:[%s219 + $0x20] sm:$0x1]
      %v229 = vld [vmem:[%s219 + $0x24] sm:$0xf]
      %v230 = vld [vmem:[%s219 + $0x28] sm:$0xf]
      %v231 = vld [vmem:[%s219 + $0x2c] sm:$0x1]
      %v232 = vld [vmem:[%s219 + $0x30] sm:$0xf]
      %v233 = vld [vmem:[%s219 + $0x34] sm:$0xf]
      %v234 = vld [vmem:[%s219 + $0x38] sm:$0x1]
      %v235 = vld [vmem:[%s219 + $0x3c] sm:$0xf]
      %v236 = vld [vmem:[%s219 + $0x40] sm:$0xf]
      %v237 = vld [vmem:[%s219 + $0x44] sm:$0x1]
      %v238 = vld [vmem:[%s219 + $0x48] sm:$0xf]
      %v239 = vld [vmem:[%s219 + $0x4c] sm:$0xf]
      %v240 = vld [vmem:[%s219 + $0x50] sm:$0x1]
      %v241 = vld [vmem:[%s219 + $0x54] sm:$0xf]
      %v242 = vld [vmem:[%s219 + $0x58] sm:$0xf]
      %v243 = vld [vmem:[%s219 + $0x5c] sm:$0x1]
      %v244 = vld [vmem:[%s219 + $0x60] sm:$0xf]
      %v245 = vld [vmem:[%s219 + $0x64] sm:$0xf]
      %v246 = vld [vmem:[%s219 + $0x68] sm:$0x1]
      %v247 = vld [vmem:[%s219 + $0x6c] sm:$0xf]
      %v248 = vld [vmem:[%s219 + $0x70] sm:$0xf]
      %v249 = vld [vmem:[%s219 + $0x74] sm:$0x1]
      %v266 = vunpack.c.l.b16 %v220
      %v267 = vunpack.c.l.b16 %v221
      %v268 = vunpack.c.l.b16 %v223
      %v269 = vunpack.c.l.b16 %v224
      %v270 = vunpack.c.l.b16 %v226
      %v271 = vunpack.c.l.b16 %v227
      %v272 = vunpack.c.l.b16 %v229
      %v273 = vunpack.c.l.b16 %v230
      %v274 = vunpack.c.l.b16 %v232
      %v275 = vunpack.c.l.b16 %v233
      %v276 = vunpack.c.l.b16 %v235
      %v277 = vunpack.c.l.b16 %v236
      %v278 = vunpack.c.l.b16 %v238
      %v279 = vunpack.c.l.b16 %v239
      %v280 = vunpack.c.l.b16 %v241
      %v281 = vunpack.c.l.b16 %v242
      %v282 = vpack.c.b16 %v267, %v266
      %v283 = vpack.c.b16 %v269, %v268
      %v284 = vpack.c.b16 %v271, %v270
      %v285 = vpack.c.b16 %v273, %v272
      %v286 = vpack.c.b16 %v275, %v274
      %v287 = vpack.c.b16 %v277, %v276
      %v288 = vpack.c.b16 %v279, %v278
      %v289 = vpack.c.b16 %v281, %v280
      %v298 = vunpack.c.l.b16 %v222
      %v299 = vunpack.c.l.b16 %v225
      %v300 = vunpack.c.l.b16 %v228
      %v301 = vunpack.c.l.b16 %v231
      %v302 = vunpack.c.l.b16 %v234
      %v303 = vunpack.c.l.b16 %v237
      %v304 = vunpack.c.l.b16 %v240
      %v305 = vunpack.c.l.b16 %v243
      %v306 = vpack.c.b16 %v298, %v298
      %v307 = vpack.c.b16 %v299, %v299
      %v308 = vpack.c.b16 %v300, %v300
      %v309 = vpack.c.b16 %v301, %v301
      %v310 = vpack.c.b16 %v302, %v302
      %v311 = vpack.c.b16 %v303, %v303
      %v312 = vpack.c.b16 %v304, %v304
      %v313 = vpack.c.b16 %v305, %v305
      %vm314 = vsmask.f32 7424
      %v316 = vshrl.u32 %v282, 16
      %v318 = vshll.u32 %v282, 16
      %v320 = vrot.slane %v318, 1
      %v321 = vor.u32 %v316, %v320
      %v323 = vshll.u32 %v306, 16
      %v325 = vrot.slane %v323, 1
      %v326 = vsel %vm314, %v321, %v325
      %v328 = vshrl.u32 %v283, 16
      %v330 = vshll.u32 %v283, 16
      %v332 = vrot.slane %v330, 1
      %v333 = vor.u32 %v328, %v332
      %v335 = vshll.u32 %v307, 16
      %v337 = vrot.slane %v335, 1
      %v338 = vsel %vm314, %v333, %v337
      %v340 = vshrl.u32 %v284, 16
      %v342 = vshll.u32 %v284, 16
      %v344 = vrot.slane %v342, 1
      %v345 = vor.u32 %v340, %v344
      %v347 = vshll.u32 %v308, 16
      %v349 = vrot.slane %v347, 1
      %v350 = vsel %vm314, %v345, %v349
      %v352 = vshrl.u32 %v285, 16
      %v354 = vshll.u32 %v285, 16
      %v356 = vrot.slane %v354, 1
      %v357 = vor.u32 %v352, %v356
      %v359 = vshll.u32 %v309, 16
      %v361 = vrot.slane %v359, 1
      %v362 = vsel %vm314, %v357, %v361
      %v364 = vshrl.u32 %v286, 16
      %v366 = vshll.u32 %v286, 16
      %v368 = vrot.slane %v366, 1
      %v369 = vor.u32 %v364, %v368
      %v371 = vshll.u32 %v310, 16
      %v373 = vrot.slane %v371, 1
      %v374 = vsel %vm314, %v369, %v373
      %v376 = vshrl.u32 %v287, 16
      %v378 = vshll.u32 %v287, 16
      %v380 = vrot.slane %v378, 1
      %v381 = vor.u32 %v376, %v380
      %v383 = vshll.u32 %v311, 16
      %v385 = vrot.slane %v383, 1
      %v386 = vsel %vm314, %v381, %v385
      %v388 = vshrl.u32 %v288, 16
      %v390 = vshll.u32 %v288, 16
      %v392 = vrot.slane %v390, 1
      %v393 = vor.u32 %v388, %v392
      %v395 = vshll.u32 %v312, 16
      %v397 = vrot.slane %v395, 1
      %v398 = vsel %vm314, %v393, %v397
      %v400 = vshrl.u32 %v289, 16
      %v402 = vshll.u32 %v289, 16
      %v404 = vrot.slane %v402, 1
      %v405 = vor.u32 %v400, %v404
      %v407 = vshll.u32 %v313, 16
      %v409 = vrot.slane %v407, 1
      %v410 = vsel %vm314, %v405, %v409
      %411 = vrot.lane.b32.xlu0 %v326, 4
      %v412 = vpop.permute.xlu0 %411
      %413 = vrot.lane.b32.xlu0 %v338, 4
      %v414 = vpop.permute.xlu0 %413
      %415 = vrot.lane.b32.xlu0 %v350, 4
      %v416 = vpop.permute.xlu0 %415
      %417 = vrot.lane.b32.xlu0 %v362, 4
      %v418 = vpop.permute.xlu0 %417
      %419 = vrot.lane.b32.xlu0 %v374, 4
      %v420 = vpop.permute.xlu0 %419
      %421 = vrot.lane.b32.xlu0 %v386, 4
      %v422 = vpop.permute.xlu0 %421
      %423 = vrot.lane.b32.xlu0 %v398, 4
      %v424 = vpop.permute.xlu0 %423
      %425 = vrot.lane.b32.xlu0 %v410, 4
      %v426 = vpop.permute.xlu0 %425
      %vm427 = vcmask 1046528
      %v428 = vrot.slane %v282, 1
      %v429 = vrot.slane %v306, 1
      %v430 = vsel %vm427, %v428, %v429
      %v431 = vrot.slane %v283, 1
      %v432 = vrot.slane %v307, 1
      %v433 = vsel %vm427, %v431, %v432
      %v434 = vrot.slane %v284, 1
      %v435 = vrot.slane %v308, 1
      %v436 = vsel %vm427, %v434, %v435
      %v437 = vrot.slane %v285, 1
      %v438 = vrot.slane %v309, 1
      %v439 = vsel %vm427, %v437, %v438
      %v440 = vrot.slane %v286, 1
      %v441 = vrot.slane %v310, 1
      %v442 = vsel %vm427, %v440, %v441
      %v443 = vrot.slane %v287, 1
      %v444 = vrot.slane %v311, 1
      %v445 = vsel %vm427, %v443, %v444
      %v446 = vrot.slane %v288, 1
      %v447 = vrot.slane %v312, 1
      %v448 = vsel %vm427, %v446, %v447
      %v449 = vrot.slane %v289, 1
      %v450 = vrot.slane %v313, 1
      %v451 = vsel %vm427, %v449, %v450
      %452 = vrot.lane.b32.xlu0 %v430, 8
      %v453 = vpop.permute.xlu0 %452
      %454 = vrot.lane.b32.xlu0 %v433, 8
      %v455 = vpop.permute.xlu0 %454
      %456 = vrot.lane.b32.xlu0 %v436, 8
      %v457 = vpop.permute.xlu0 %456
      %458 = vrot.lane.b32.xlu0 %v439, 8
      %v459 = vpop.permute.xlu0 %458
      %460 = vrot.lane.b32.xlu0 %v442, 8
      %v461 = vpop.permute.xlu0 %460
      %462 = vrot.lane.b32.xlu0 %v445, 8
      %v463 = vpop.permute.xlu0 %462
      %464 = vrot.lane.b32.xlu0 %v448, 8
      %v465 = vpop.permute.xlu0 %464
      %466 = vrot.lane.b32.xlu0 %v451, 8
      %v467 = vpop.permute.xlu0 %466
      %v470 = vunpack.c.l.b16 %v244
      %v471 = vunpack.c.l.b16 %v245
      %v472 = vpack.c.b16 %v471, %v470
      %473 = vrot.lane.b32.xlu0 %v283, 12
      %v474 = vpop.permute.xlu0 %473
      %475 = vrot.lane.b32.xlu0 %v284, 12
      %v476 = vpop.permute.xlu0 %475
      %477 = vrot.lane.b32.xlu0 %v285, 12
      %v478 = vpop.permute.xlu0 %477
      %479 = vrot.lane.b32.xlu0 %v286, 12
      %v480 = vpop.permute.xlu0 %479
      %481 = vrot.lane.b32.xlu0 %v287, 12
      %v482 = vpop.permute.xlu0 %481
      %483 = vrot.lane.b32.xlu0 %v288, 12
      %v484 = vpop.permute.xlu0 %483
      %485 = vrot.lane.b32.xlu0 %v289, 12
      %v486 = vpop.permute.xlu0 %485
      %487 = vrot.lane.b32.xlu0 %v472, 12
      %v488 = vpop.permute.xlu0 %487
      %v490 = vunpack.c.l.b16 %v246
      %v491 = vpack.c.b16 %v490, %v490
      %v493 = vshrl.u32 %v472, 16
      %v495 = vshll.u32 %v472, 16
      %v497 = vrot.slane %v495, 1
      %v498 = vor.u32 %v493, %v497
      %v500 = vshll.u32 %v491, 16
      %v502 = vrot.slane %v500, 1
      %v503 = vsel %vm314, %v498, %v502
      %504 = vrot.lane.b32.xlu0 %v338, 16
      %v505 = vpop.permute.xlu0 %504
      %506 = vrot.lane.b32.xlu0 %v350, 16
      %v507 = vpop.permute.xlu0 %506
      %508 = vrot.lane.b32.xlu0 %v362, 16
      %v509 = vpop.permute.xlu0 %508
      %510 = vrot.lane.b32.xlu0 %v374, 16
      %v511 = vpop.permute.xlu0 %510
      %512 = vrot.lane.b32.xlu0 %v386, 16
      %v513 = vpop.permute.xlu0 %512
      %514 = vrot.lane.b32.xlu0 %v398, 16
      %v515 = vpop.permute.xlu0 %514
      %516 = vrot.lane.b32.xlu0 %v410, 16
      %v517 = vpop.permute.xlu0 %516
      %518 = vrot.lane.b32.xlu0 %v503, 16
      %v519 = vpop.permute.xlu0 %518
      %v520 = vrot.slane %v472, 1
      %v521 = vrot.slane %v491, 1
      %v522 = vsel %vm427, %v520, %v521
      %523 = vrot.lane.b32.xlu0 %v433, 20
      %v524 = vpop.permute.xlu0 %523
      %525 = vrot.lane.b32.xlu0 %v436, 20
      %v526 = vpop.permute.xlu0 %525
      %527 = vrot.lane.b32.xlu0 %v439, 20
      %v528 = vpop.permute.xlu0 %527
      %529 = vrot.lane.b32.xlu0 %v442, 20
      %v530 = vpop.permute.xlu0 %529
      %531 = vrot.lane.b32.xlu0 %v445, 20
      %v532 = vpop.permute.xlu0 %531
      %533 = vrot.lane.b32.xlu0 %v448, 20
      %v534 = vpop.permute.xlu0 %533
      %535 = vrot.lane.b32.xlu0 %v451, 20
      %v536 = vpop.permute.xlu0 %535
      %537 = vrot.lane.b32.xlu0 %v522, 20
      %v538 = vpop.permute.xlu0 %537
      %v541 = vunpack.c.l.b16 %v247
      %v542 = vunpack.c.l.b16 %v248
      %v543 = vpack.c.b16 %v542, %v541
      %544 = vrot.lane.b32.xlu0 %v284, 24
      %v545 = vpop.permute.xlu0 %544
      %546 = vrot.lane.b32.xlu0 %v285, 24
      %v547 = vpop.permute.xlu0 %546
      %548 = vrot.lane.b32.xlu0 %v286, 24
      %v549 = vpop.permute.xlu0 %548
      %550 = vrot.lane.b32.xlu0 %v287, 24
      %v551 = vpop.permute.xlu0 %550
      %552 = vrot.lane.b32.xlu0 %v288, 24
      %v553 = vpop.permute.xlu0 %552
      %554 = vrot.lane.b32.xlu0 %v289, 24
      %v555 = vpop.permute.xlu0 %554
      %556 = vrot.lane.b32.xlu0 %v472, 24
      %v557 = vpop.permute.xlu0 %556
      %558 = vrot.lane.b32.xlu0 %v543, 24
      %v559 = vpop.permute.xlu0 %558
      %v561 = vunpack.c.l.b16 %v249
      %v562 = vpack.c.b16 %v561, %v561
      %v564 = vshrl.u32 %v543, 16
      %v566 = vshll.u32 %v543, 16
      %v568 = vrot.slane %v566, 1
      %v569 = vor.u32 %v564, %v568
      %v571 = vshll.u32 %v562, 16
      %v573 = vrot.slane %v571, 1
      %v574 = vsel %vm314, %v569, %v573
      %575 = vrot.lane.b32.xlu0 %v350, 28
      %v576 = vpop.permute.xlu0 %575
      %577 = vrot.lane.b32.xlu0 %v362, 28
      %v578 = vpop.permute.xlu0 %577
      %579 = vrot.lane.b32.xlu0 %v374, 28
      %v580 = vpop.permute.xlu0 %579
      %581 = vrot.lane.b32.xlu0 %v386, 28
      %v582 = vpop.permute.xlu0 %581
      %583 = vrot.lane.b32.xlu0 %v398, 28
      %v584 = vpop.permute.xlu0 %583
      %585 = vrot.lane.b32.xlu0 %v410, 28
      %v586 = vpop.permute.xlu0 %585
      %587 = vrot.lane.b32.xlu0 %v503, 28
      %v588 = vpop.permute.xlu0 %587
      %589 = vrot.lane.b32.xlu0 %v574, 28
      %v590 = vpop.permute.xlu0 %589
      %v591 = vrot.slane %v543, 1
      %v592 = vrot.slane %v562, 1
      %v593 = vsel %vm427, %v591, %v592
      %594 = vrot.lane.b32.xlu0 %v436, 32
      %v595 = vpop.permute.xlu0 %594
      %596 = vrot.lane.b32.xlu0 %v439, 32
      %v597 = vpop.permute.xlu0 %596
      %598 = vrot.lane.b32.xlu0 %v442, 32
      %v599 = vpop.permute.xlu0 %598
      %600 = vrot.lane.b32.xlu0 %v445, 32
      %v601 = vpop.permute.xlu0 %600
      %602 = vrot.lane.b32.xlu0 %v448, 32
      %v603 = vpop.permute.xlu0 %602
      %604 = vrot.lane.b32.xlu0 %v451, 32
      %v605 = vpop.permute.xlu0 %604
      %606 = vrot.lane.b32.xlu0 %v522, 32
      %v607 = vpop.permute.xlu0 %606
      %608 = vrot.lane.b32.xlu0 %v593, 32
      %v609 = vpop.permute.xlu0 %608
      %vm610 = vcmask 31744
      %v612 = vsel %vm610, %v282, %v412
      %v614 = vsel %vm610, %v283, %v414
      %v616 = vsel %vm610, %v284, %v416
      %v618 = vsel %vm610, %v285, %v418
      %v620 = vsel %vm610, %v286, %v420
      %v622 = vsel %vm610, %v287, %v422
      %v624 = vsel %vm610, %v288, %v424
      %v626 = vsel %vm610, %v289, %v426
      %vm627 = vcmask 64512
      %v629 = vsel %vm627, %v612, %v453
      %v631 = vsel %vm627, %v614, %v455
      %v633 = vsel %vm627, %v616, %v457
      %v635 = vsel %vm627, %v618, %v459
      %v637 = vsel %vm627, %v620, %v461
      %v639 = vsel %vm627, %v622, %v463
      %v641 = vsel %vm627, %v624, %v465
      %v643 = vsel %vm627, %v626, %v467
      %vm644 = vcmask 97280
      %v646 = vsel %vm644, %v629, %v474
      %v648 = vsel %vm644, %v631, %v476
      %v650 = vsel %vm644, %v633, %v478
      %v652 = vsel %vm644, %v635, %v480
      %v654 = vsel %vm644, %v637, %v482
      %v656 = vsel %vm644, %v639, %v484
      %v658 = vsel %vm644, %v641, %v486
      %v660 = vsel %vm644, %v643, %v488
      %vm661 = vcmask 130048
      %v663 = vsel %vm661, %v646, %v505
      %v665 = vsel %vm661, %v648, %v507
      %v667 = vsel %vm661, %v650, %v509
      %v669 = vsel %vm661, %v652, %v511
      %v671 = vsel %vm661, %v654, %v513
      %v673 = vsel %vm661, %v656, %v515
      %v675 = vsel %vm661, %v658, %v517
      %v677 = vsel %vm661, %v660, %v519
      %vm678 = vcmask 162816
      %v680 = vsel %vm678, %v663, %v524
      %v682 = vsel %vm678, %v665, %v526
      %v684 = vsel %vm678, %v667, %v528
      %v686 = vsel %vm678, %v669, %v530
      %v688 = vsel %vm678, %v671, %v532
      %v690 = vsel %vm678, %v673, %v534
      %v692 = vsel %vm678, %v675, %v536
      %v694 = vsel %vm678, %v677, %v538
      %vm695 = vcmask 195584
      %v697 = vsel %vm695, %v680, %v545
      %v699 = vsel %vm695, %v682, %v547
      %v701 = vsel %vm695, %v684, %v549
      %v703 = vsel %vm695, %v686, %v551
      %v705 = vsel %vm695, %v688, %v553
      %v707 = vsel %vm695, %v690, %v555
      %v709 = vsel %vm695, %v692, %v557
      %v711 = vsel %vm695, %v694, %v559
      %vm712 = vcmask 228352
      %v714 = vsel %vm712, %v697, %v576
      %v716 = vsel %vm712, %v699, %v578
      %v718 = vsel %vm712, %v701, %v580
      %v720 = vsel %vm712, %v703, %v582
      %v722 = vsel %vm712, %v705, %v584
      %v724 = vsel %vm712, %v707, %v586
      %v726 = vsel %vm712, %v709, %v588
      %v728 = vsel %vm712, %v711, %v590
      %vm729 = vcmask 261120
      %v731 = vsel %vm729, %v714, %v595
      %v733 = vsel %vm729, %v716, %v597
      %v735 = vsel %vm729, %v718, %v599
      %v737 = vsel %vm729, %v720, %v601
      %v739 = vsel %vm729, %v722, %v603
      %v741 = vsel %vm729, %v724, %v605
      %v743 = vsel %vm729, %v726, %v607
      %v745 = vsel %vm729, %v728, %v609
      %v746 = vld [vmem:[%s1] sm:$0xf]
      %v747 = vld [vmem:[%s1 + $0x4] sm:$0xf]
      %v748 = vld [vmem:[%s1 + $0x8] sm:$0xf]
      %v749 = vld [vmem:[%s1 + $0xc] sm:$0xf]
      %v750 = vld [vmem:[%s1 + $0x10] sm:$0x3]
      %v756 = vunpack.c.l.b16 %v746
      %v757 = vunpack.c.l.b16 %v747
      %v758 = vunpack.c.l.b16 %v748
      %v759 = vunpack.c.l.b16 %v749
      %v760 = vunpack.c.l.b16 %v750
      %v761 = vpack.c.b16 %v757, %v756
      %v762 = vpack.c.b16 %v759, %v758
      %v763 = vpack.c.b16 %v760, %v760
      %vm766 = vcmask 293888
      %v767 = vsel %vm766, %v731, 0
      %v769 = vsel %vm766, %v733, 0
      %v771 = vsel %vm766, %v735, 0
      %v773 = vsel %vm766, %v737, 0
      %v775 = vsel %vm766, %v739, 0
      %v777 = vsel %vm766, %v741, 0
      %v779 = vsel %vm766, %v743, 0
      %v781 = vsel %vm766, %v745, 0
      %vm783 = vcmask 1041408
      %v785 = vsel %vm783, %v763, 0
      %787 = vmatprep.subr.bf16.mxu0 0
      %788 = vmatpush1.bf16.msra.mxu0 %v761
      %789 = vmatprep.subr.bf16.mxu0 0
      %790 = vmatpush1.bf16.msra.mxu0 %v762
      %791 = vmatprep.subr.bf16.mxu0 0
      %792 = vmatpush1.bf16.msra.mxu0 %v785
      %793 = vmatprep.subr.bf16.mxu0 0
      %794 = vmatpush1.bf16.msra.mxu0 0
      %795 = vmatprep.subr.bf16.mxu0 0
      %796 = vmatpush1.bf16.msra.mxu0 0
      %797 = vmatprep.subr.bf16.mxu0 0
      %798 = vmatpush1.bf16.msra.mxu0 0
      %799 = vmatprep.subr.bf16.mxu0 0
      %800 = vmatpush1.bf16.msra.mxu0 0
      %801 = vmatprep.subr.bf16.mxu0 0
      %802 = vmatpush1.bf16.msra.mxu0 0
      %803 = vmatprep.subr.bf16.mxu0 0
      %804 = vmatpush1.bf16.msra.mxu0 0
      %805 = vmatprep.subr.bf16.mxu0 0
      %806 = vmatpush1.bf16.msra.mxu0 0
      %807 = vmatprep.subr.bf16.mxu0 0
      %808 = vmatpush1.bf16.msra.mxu0 0
      %809 = vmatprep.subr.bf16.mxu0 0
      %810 = vmatpush1.bf16.msra.mxu0 0
      %811 = vmatprep.subr.bf16.mxu0 0
      %812 = vmatpush1.bf16.msra.mxu0 0
      %813 = vmatprep.subr.bf16.mxu0 0
      %814 = vmatpush1.bf16.msra.mxu0 0
      %815 = vmatprep.subr.bf16.mxu0 0
      %816 = vmatpush1.bf16.msra.mxu0 0
      %817 = vmatprep.subr.bf16.mxu0 0
      %818 = vmatpush1.bf16.msra.mxu0 0
      %819 = vmatprep.mubr.bf16.mxu0 0
      %820 = vmatmul.mubr.bf16.gmra.mrb[0].mxu0 %v767
      %v821 = vpop.f32.mrb[0].mxu0
      %v822 = vadd.f32 0.0, %v821
      %v823 = vpop.f32.mrb[0].mxu0
      %v824 = vpop.f32.mrb[0].mxu0
      %v825 = vadd.f32 0.0, %v824
      %v826 = vpop.f32.mrb[0].mxu0
      %827 = vmatprep.mubr.bf16.mxu0 0
      %828 = vmatmul.mubr.bf16.gmra.mrb[0].mxu0 %v769
      %v829 = vpop.f32.mrb[0].mxu0
      %v830 = vadd.f32 0.0, %v829
      %v831 = vpop.f32.mrb[0].mxu0
      %v832 = vpop.f32.mrb[0].mxu0
      %v833 = vadd.f32 0.0, %v832
      %v834 = vpop.f32.mrb[0].mxu0
      %835 = vmatprep.mubr.bf16.mxu0 0
      %836 = vmatmul.mubr.bf16.gmra.mrb[0].mxu0 %v771
      %v837 = vpop.f32.mrb[0].mxu0
      %v838 = vadd.f32 0.0, %v837
      %v839 = vpop.f32.mrb[0].mxu0
      %v840 = vpop.f32.mrb[0].mxu0
      %v841 = vadd.f32 0.0, %v840
      %v842 = vpop.f32.mrb[0].mxu0
      %843 = vmatprep.mubr.bf16.mxu0 0
      %844 = vmatmul.mubr.bf16.gmra.mrb[0].mxu0 %v773
      %v845 = vpop.f32.mrb[0].mxu0
      %v846 = vadd.f32 0.0, %v845
      %v847 = vpop.f32.mrb[0].mxu0
      %v848 = vpop.f32.mrb[0].mxu0
      %v849 = vadd.f32 0.0, %v848
      %v850 = vpop.f32.mrb[0].mxu0
      %851 = vmatprep.mubr.bf16.mxu0 0
      %852 = vmatmul.mubr.bf16.gmra.mrb[0].mxu0 %v775
      %v853 = vpop.f32.mrb[0].mxu0
      %v854 = vadd.f32 0.0, %v853
      %v855 = vpop.f32.mrb[0].mxu0
      %v856 = vpop.f32.mrb[0].mxu0
      %v857 = vadd.f32 0.0, %v856
      %v858 = vpop.f32.mrb[0].mxu0
      %859 = vmatprep.mubr.bf16.mxu0 0
      %860 = vmatmul.mubr.bf16.gmra.mrb[0].mxu0 %v777
      %v861 = vpop.f32.mrb[0].mxu0
      %v862 = vadd.f32 0.0, %v861
      %v863 = vpop.f32.mrb[0].mxu0
      %v864 = vpop.f32.mrb[0].mxu0
      %v865 = vadd.f32 0.0, %v864
      %v866 = vpop.f32.mrb[0].mxu0
      %867 = vmatprep.mubr.bf16.mxu0 0
      %868 = vmatmul.mubr.bf16.gmra.mrb[0].mxu0 %v779
      %v869 = vpop.f32.mrb[0].mxu0
      %v870 = vadd.f32 0.0, %v869
      %v871 = vpop.f32.mrb[0].mxu0
      %v872 = vpop.f32.mrb[0].mxu0
      %v873 = vadd.f32 0.0, %v872
      %v874 = vpop.f32.mrb[0].mxu0
      %875 = vmatprep.mubr.bf16.mxu0 0
      %876 = vmatmul.mubr.bf16.gmra.mrb[0].mxu0 %v781
      %v877 = vpop.f32.mrb[0].mxu0
      %v878 = vadd.f32 0.0, %v877
      %v879 = vpop.f32.mrb[0].mxu0
      %v880 = vpop.f32.mrb[0].mxu0
      %v881 = vadd.f32 0.0, %v880
      %v882 = vpop.f32.mrb[0].mxu0
      %883 = vdwg.mxu0
      %884 = vst.msk [vmem:[%s203] sm:$0xff] %vm729, %v822
      %885 = vst.msk [vmem:[%s203 + $0x8] sm:$0xff] %vm729, %v825
      %886 = vst.msk [vmem:[%s203 + $0x10] sm:$0xff] %vm729, %v830
      %887 = vst.msk [vmem:[%s203 + $0x18] sm:$0xff] %vm729, %v833
      %888 = vst.msk [vmem:[%s203 + $0x20] sm:$0xff] %vm729, %v838
      %889 = vst.msk [vmem:[%s203 + $0x28] sm:$0xff] %vm729, %v841
      %890 = vst.msk [vmem:[%s203 + $0x30] sm:$0xff] %vm729, %v846
      %891 = vst.msk [vmem:[%s203 + $0x38] sm:$0xff] %vm729, %v849
      %892 = vst.msk [vmem:[%s203 + $0x40] sm:$0xff] %vm729, %v854
      %893 = vst.msk [vmem:[%s203 + $0x48] sm:$0xff] %vm729, %v857
      %894 = vst.msk [vmem:[%s203 + $0x50] sm:$0xff] %vm729, %v862
      %895 = vst.msk [vmem:[%s203 + $0x58] sm:$0xff] %vm729, %v865
      %896 = vst.msk [vmem:[%s203 + $0x60] sm:$0xff] %vm729, %v870
      %897 = vst.msk [vmem:[%s203 + $0x68] sm:$0xff] %vm729, %v873
      %898 = vst.msk [vmem:[%s203 + $0x70] sm:$0xff] %vm729, %v878
      %899 = vst.msk [vmem:[%s203 + $0x78] sm:$0xff] %vm729, %v881
      %v900 = vsel %vm729, %v822, 0.0
      %v901 = vsel %vm729, %v825, 0.0
      %v902 = vadd.f32 %v900, %v901
      %v903 = vsel %vm729, %v830, 0.0
      %v904 = vadd.f32 %v902, %v903
      %v905 = vsel %vm729, %v833, 0.0
      %v906 = vadd.f32 %v904, %v905
      %v907 = vsel %vm729, %v838, 0.0
      %v908 = vadd.f32 %v906, %v907
      %v909 = vsel %vm729, %v841, 0.0
      %v910 = vadd.f32 %v908, %v909
      %v911 = vsel %vm729, %v846, 0.0
      %v912 = vadd.f32 %v910, %v911
      %v913 = vsel %vm729, %v849, 0.0
      %v914 = vadd.f32 %v912, %v913
      %v915 = vsel %vm729, %v854, 0.0
      %v916 = vadd.f32 %v914, %v915
      %v917 = vsel %vm729, %v857, 0.0
      %v918 = vadd.f32 %v916, %v917
      %v919 = vsel %vm729, %v862, 0.0
      %v920 = vadd.f32 %v918, %v919
      %v921 = vsel %vm729, %v865, 0.0
      %v922 = vadd.f32 %v920, %v921
      %v923 = vsel %vm729, %v870, 0.0
      %v924 = vadd.f32 %v922, %v923
      %v925 = vsel %vm729, %v873, 0.0
      %v926 = vadd.f32 %v924, %v925
      %v927 = vsel %vm729, %v878, 0.0
      %v928 = vadd.f32 %v926, %v927
      %v929 = vsel %vm729, %v881, 0.0
      %v930 = vadd.f32 %v928, %v929
      %v931 = vrot.slane %v930, 4
      %v932 = vadd.f32 %v930, %v931
      %v933 = vrot.slane %v932, 2
      %v934 = vadd.f32 %v932, %v933
      %v935 = vrot.slane %v934, 1
      %v936 = vadd.f32 %v934, %v935
      %vm937 = vcmask 253952
      %938 = vst.msk [vmem:[%s212] sm:$0x1] %vm937, %v936
      %v939 = vmul.f32 %v822, %v822
      %v940 = vmul.f32 %v825, %v825
      %v941 = vmul.f32 %v830, %v830
      %v942 = vmul.f32 %v833, %v833
      %v943 = vmul.f32 %v838, %v838
      %v944 = vmul.f32 %v841, %v841
      %v945 = vmul.f32 %v846, %v846
      %v946 = vmul.f32 %v849, %v849
      %v947 = vmul.f32 %v854, %v854
      %v948 = vmul.f32 %v857, %v857
      %v949 = vmul.f32 %v862, %v862
      %v950 = vmul.f32 %v865, %v865
      %v951 = vmul.f32 %v870, %v870
      %v952 = vmul.f32 %v873, %v873
      %v953 = vmul.f32 %v878, %v878
      %v954 = vmul.f32 %v881, %v881
      %v955 = vsel %vm729, %v939, 0.0
      %v956 = vsel %vm729, %v940, 0.0
      %v957 = vadd.f32 %v955, %v956
      %v958 = vsel %vm729, %v941, 0.0
      %v959 = vadd.f32 %v957, %v958
      %v960 = vsel %vm729, %v942, 0.0
      %v961 = vadd.f32 %v959, %v960
      %v962 = vsel %vm729, %v943, 0.0
      %v963 = vadd.f32 %v961, %v962
      %v964 = vsel %vm729, %v944, 0.0
      %v965 = vadd.f32 %v963, %v964
      %v966 = vsel %vm729, %v945, 0.0
      %v967 = vadd.f32 %v965, %v966
      %v968 = vsel %vm729, %v946, 0.0
      %v969 = vadd.f32 %v967, %v968
      %v970 = vsel %vm729, %v947, 0.0
      %v971 = vadd.f32 %v969, %v970
      %v972 = vsel %vm729, %v948, 0.0
      %v973 = vadd.f32 %v971, %v972
      %v974 = vsel %vm729, %v949, 0.0
      %v975 = vadd.f32 %v973, %v974
      %v976 = vsel %vm729, %v950, 0.0
      %v977 = vadd.f32 %v975, %v976
      %v978 = vsel %vm729, %v951, 0.0
      %v979 = vadd.f32 %v977, %v978
      %v980 = vsel %vm729, %v952, 0.0
      %v981 = vadd.f32 %v979, %v980
      %v982 = vsel %vm729, %v953, 0.0
      %v983 = vadd.f32 %v981, %v982
      %v984 = vsel %vm729, %v954, 0.0
      %v985 = vadd.f32 %v983, %v984
      %v986 = vrot.slane %v985, 4
      %v987 = vadd.f32 %v985, %v986
      %v988 = vrot.slane %v987, 2
      %v989 = vadd.f32 %v987, %v988
      %v990 = vrot.slane %v989, 1
      %v991 = vadd.f32 %v989, %v990
      %992 = vst.msk [vmem:[%s212 + $0x1] sm:$0x1] %vm937, %v991
      %s993 = smul.u32 %s19, 2
      %s994 = sadd.s32 %s993, %s20
      %s995 = smul.u32 16, %s994
      %p996 = scmp.lt.s32.totalorder %s995, 63
      %s997 = scalar_select %p996, %s995, 63
      %s998 = smul.addr %s997, 8
      %s999 = scalar_lea.vmem %s2, %s998
      %s1000 = smul.u32 %s19, 2
      %s1001 = sadd.s32 %s1000, %s20
      %p1002 = scmp.lt.s32.totalorder %s1001, 3
      %s1003 = scalar_select %p1002, %s1001, 3
      %s1004 = smul.addr %s1003, 2
      %s1005 = scalar_lea.vmem %s3, %s1004
      // Predicated region
      $region29: #{dcgan_upconv_forward.2} parent=27 // pred_check
        %p1006 = pneg %p96
      $region30: #{dcgan_upconv_forward.2} parent=27 // pred_check_branch
        %1008 = sbr.rel (%p1006) target = $region32
      $region31: #{dcgan_upconv_forward.2} parent=27 // pred_region
        %s1009 = smul.u32 %s19, 2
        %s1010 = sadd.s32 %s1009, %s20
        %s1011 = smul.u32 16, %s1010
      $region32: #{dcgan_upconv_forward.2} parent=27 // pred_fallthru
        _
      // Predicated region
      $region33: #{dcgan_upconv_forward.2} parent=27 // pred_check
        %p1012 = pneg %p126
      $region34: #{dcgan_upconv_forward.2} parent=27 // pred_check_branch
        %1014 = sbr.rel (%p1012) target = $region36
      $region35: #{dcgan_upconv_forward.2} parent=27 // pred_region
        %s1015 = smul.u32 %s19, 2
        %s1016 = sadd.s32 %s1015, %s20
      $region36: #{dcgan_upconv_forward.2} parent=27 // pred_fallthru
        _
    $region28: #{dcgan_upconv_forward.2} parent=5 // pred_fallthru
      _
    %p1017 = scmp.le.s32.totalorder 2, %s10
    // Predicated region
    $region37: #{dcgan_upconv_forward.2} parent=5 // pred_check
      %p1018 = pneg %p1017
    $region38: #{dcgan_upconv_forward.2} parent=5 // pred_check_branch
      %1020 = sbr.rel (%p1018) target = $region40
    $region39: #{dcgan_upconv_forward.2} parent=5 // pred_region
      %s1021 = ssub.s32 %s10, 2
      // Predicated region
      $region41: #{dcgan_upconv_forward.2} parent=39 // pred_check
        %p1022 = pneg %p102
      $region42: #{dcgan_upconv_forward.2} parent=39 // pred_check_branch
        %1024 = sbr.rel (%p1022) target = $region44
      $region43: #{dcgan_upconv_forward.2} parent=39 // pred_region
        %s1025 = smul.u32 %s21, 2
        %s1026 = sadd.s32 %s1025, %s22
        %s1027 = smul.u32 16, %s1026
        %p1028 = scmp.lt.s32.totalorder %s1027, 63
        %s1029 = scalar_select %p1028, %s1027, 63
        %s1030 = smul.addr %s1029, 8
        %s1031 = scalar_lea.vmem %s2, %s1030
      $region44: #{dcgan_upconv_forward.2} parent=39 // pred_fallthru
        _
      // Predicated region
      $region45: #{dcgan_upconv_forward.2} parent=39 // pred_check
        %p1032 = pneg %p132
      $region46: #{dcgan_upconv_forward.2} parent=39 // pred_check_branch
        %1034 = sbr.rel (%p1032) target = $region48
      $region47: #{dcgan_upconv_forward.2} parent=39 // pred_region
        %s1035 = smul.u32 %s21, 2
        %s1036 = sadd.s32 %s1035, %s22
        %p1037 = scmp.lt.s32.totalorder %s1036, 3
        %s1038 = scalar_select %p1037, %s1036, 3
        %s1039 = smul.addr %s1038, 2
        %s1040 = scalar_lea.vmem %s3, %s1039
      $region48: #{dcgan_upconv_forward.2} parent=39 // pred_fallthru
        _
    $region40: #{dcgan_upconv_forward.2} parent=5 // pred_fallthru
      _
  $region6: #{dcgan_upconv_forward.2} parent=0 // loop_footer
    %s14 = sadd.s32 1, %s10
  $region7: #{dcgan_upconv_forward.2} parent=0 // loop_footer_branch
    %9 = sbr.rel target = $region3
  $region8: #{dcgan_upconv_forward.2} parent=0 // loop_exit
    _

</llo_original>
